<compile_context>
chip_gen: v7x
topology: tpu7x:2x2x1
jax: 0.10.0
libtpu: 0.0.40
codegen_flags: <defaults>
</compile_context>

<pallas_src>
import functools
import math

import jax
import jax.numpy as jnp
from jax.experimental import pallas as pl
from jax.experimental.pallas import tpu as pltpu


def _fold_lanes(row, tile_n):
    """Sum a (1, tile_n) row into a lane-dense (1, 128) partial.

    tile_n is a static multiple of 128, so every slice is vreg-aligned and this
    lowers to tile_n/128 - 1 single-vreg VPU adds (no relayout).
    """
    acc = row[:, 0:128]
    for g in range(1, tile_n // 128):
        acc = acc + row[:, g * 128:(g + 1) * 128]
    return acc


def _sce_kernel(pred_ref, labels_ref, out_ref, *,
                alpha, rce_scale, tile_n, rem, has_remainder):
    # pred_ref:   (C, tile_n) native dtype  (classes on sublanes, batch on lanes)
    # labels_ref: (1, tile_n) int8/int32
    logits = pred_ref[...].astype(jnp.float32)
    labels = labels_ref[...].astype(jnp.int32)
    c = logits.shape[0]

    class_ids = jax.lax.broadcasted_iota(jnp.int32, (c, tile_n), 0)
    is_true = class_ids == labels                              # (C, tile_n) bool

    # numerically-stable softmax pieces (class axis = sublanes, only C terms)
    m = jnp.max(logits, axis=0, keepdims=True)                 # (1, tile_n)
    e = jnp.exp(logits - m)                                    # (C, tile_n)
    s = jnp.sum(e, axis=0, keepdims=True)                      # (1, tile_n)
    inv_s = pl.reciprocal(s)                                   # exact
    log_s = jnp.log(s)

    # cross entropy: t = logit of true class via masked max (no float one-hot)
    t = jnp.max(jnp.where(is_true, logits, -jnp.inf), axis=0, keepdims=True)
    ce_i = (m + log_s) - t                                     # -log_softmax[true]

    # reverse CE: rce_i = beta * (-log(1e-4)) * (sum_c clip(p_c) - clip(p_true))
    p_clip = jnp.clip(e * inv_s, 1e-7, 1.0)                    # (C, tile_n)
    p_clip_sum = jnp.sum(p_clip, axis=0, keepdims=True)
    p_true = jnp.max(jnp.where(is_true, p_clip, 0.0), axis=0, keepdims=True)
    rce_i = rce_scale * (p_clip_sum - p_true)

    loss_row = alpha * ce_i + rce_i                            # (1, tile_n)

    if has_remainder:
        pid = pl.program_id(0)
        last = pl.num_programs(0) - 1

        @pl.when(pid == last)
        def _():
            # mask padded/garbage columns of the last tile only
            col = jax.lax.broadcasted_iota(jnp.int32, (1, tile_n), 1)
            out_ref[0] = _fold_lanes(jnp.where(col < rem, loss_row, 0.0), tile_n)

        @pl.when(pid < last)
        def _():
            out_ref[0] = _fold_lanes(loss_row, tile_n)
    else:
        out_ref[0] = _fold_lanes(loss_row, tile_n)


def symmetric_cross_entropy_loss(pred, labels, *, alpha, beta, num_classes=6,
                                 tile_n=8192, pred_is_transposed=False):
    """Forward of SymmetricCrossEntropyLoss (weight=None path).

    pred:   (N, C) float logits, or (C, N) if pred_is_transposed=True
            (preferred: skips one extra HBM transpose pass over pred).
    labels: (N,) integer class ids.
    """
    if pred_is_transposed:
        c, n = pred.shape
        pred_t = pred
    else:
        n, c = pred.shape
        # NOTE: this transpose is one extra HBM pass over pred; produce pred
        # already as (C, N) upstream and pass pred_is_transposed=True to avoid it.
        pred_t = jnp.swapaxes(pred, 0, 1)
    assert c == num_classes

    # Labels at 1 B/sample when num_classes fits in int8 (ideally the caller
    # already provides int8/uint8 labels so this cast fuses upstream).
    if jnp.issubdtype(labels.dtype, jnp.integer) and labels.dtype.itemsize == 1:
        labels_row = labels.reshape(1, n)
    elif num_classes <= 127:
        labels_row = labels.astype(jnp.int8).reshape(1, n)
    else:
        labels_row = labels.astype(jnp.int32).reshape(1, n)

    assert tile_n % 128 == 0, "tile_n must be a multiple of the 128-lane width"
    # Small N -> a single (rounded-up) tile; otherwise keep the large default.
    tile_n = max(128, min(tile_n, pl.cdiv(n, 128) * 128))
    num_tiles = pl.cdiv(n, tile_n)
    rem = n - (num_tiles - 1) * tile_n           # valid columns in the last tile
    has_remainder = rem != tile_n

    kernel = functools.partial(
        _sce_kernel,
        alpha=float(alpha),
        rce_scale=float(beta) * (-math.log(1e-4)),
        tile_n=tile_n, rem=rem, has_remainder=has_remainder,
    )

    partials = pl.pallas_call(
        kernel,
        out_shape=jax.ShapeDtypeStruct((num_tiles, 1, 128), jnp.float32),
        grid_spec=pltpu.PrefetchScalarGridSpec(
            num_scalar_prefetch=0,
            grid=(num_tiles,),
            in_specs=[
                pl.BlockSpec((num_classes, tile_n), lambda i: (0, i)),  # pred (C,tile)
                pl.BlockSpec((1, tile_n), lambda i: (0, i)),            # labels row
            ],
            out_specs=pl.BlockSpec((1, 1, 128), lambda i: (i, 0, 0)),   # per-tile partial
        ),
        compiler_params=pltpu.CompilerParams(
            dimension_semantics=("parallel",),     # independent tiles -> megacore on v7x
            vmem_limit_bytes=32 * 1024 * 1024,     # safe on v5e/v6e/v7x
        ),
    )(pred_t, labels_row)

    # tiny final reduction + mean scaling outside the kernel
    return jnp.sum(partials) * (1.0 / n)


def _reference(pred, labels, alpha, beta, num_classes):
    # pure-JAX reference matching the PyTorch module (weight=None path)
    logits = pred.astype(jnp.float32)
    log_softmax = jax.nn.log_softmax(logits, axis=1)
    onehot = jax.nn.one_hot(labels, num_classes, dtype=jnp.float32)
    ce = -jnp.mean(jnp.sum(onehot * log_softmax, axis=1))
    p = jnp.clip(jax.nn.softmax(logits, axis=1), 1e-7, 1.0)
    label_clamped = jnp.clip(onehot, 1e-4, 1.0)
    rce = jnp.mean(-jnp.sum(p * jnp.log(label_clamped), axis=1))
    return alpha * ce + beta * rce


if __name__ == "__main__":
    key = jax.random.PRNGKey(0)
    k1, k2, k3, k4 = jax.random.split(key, 4)

    alpha, beta, C = 0.1, 1.0, 6

    # Test 1: small batch -> tile auto-clamped to 1024, single grid step.
    N1 = 1000
    pred1 = jax.random.normal(k1, (N1, C), dtype=jnp.float32)
    labels1 = jax.random.randint(k2, (N1,), 0, C, dtype=jnp.int32)
    loss1 = jax.block_until_ready(
        symmetric_cross_entropy_loss(pred1, labels1, alpha=alpha, beta=beta,
                                     num_classes=C))
    ref1 = _reference(pred1, labels1, alpha, beta, C)
    assert jnp.allclose(loss1, ref1, rtol=1e-4, atol=1e-4), (loss1, ref1)

    # Test 2: multiple parallel tiles + masked remainder tile (4097 = 4*1024 + 1).
    N2 = 4097
    pred2 = jax.random.normal(k3, (N2, C), dtype=jnp.float32) * 3.0
    labels2 = jax.random.randint(k4, (N2,), 0, C, dtype=jnp.int32)
    loss2 = jax.block_until_ready(
        symmetric_cross_entropy_loss(pred2, labels2, alpha=alpha, beta=beta,
                                     num_classes=C, tile_n=1024))
    ref2 = _reference(pred2, labels2, alpha, beta, C)
    assert jnp.allclose(loss2, ref2, rtol=1e-4, atol=1e-4), (loss2, ref2)

    print("KERNEL_OK")
</pallas_src>

<mosaic_0001>
module attributes {stable_mosaic.version = 11 : i64} {
  func.func @_sce_kernel(%arg0: i32, %arg1: memref<6x1024xf32, #tpu.memory_space<vmem>>, %arg2: memref<1x1024xi8, #tpu.memory_space<vmem>>, %arg3: memref<1x1x128xf32, #tpu.memory_space<vmem>>) attributes {dimension_semantics = [#tpu.dimension_semantics<parallel>], iteration_bounds = array<i64: 1>, scalar_prefetch = 0 : i64, scratch_operands = 0 : i64, tpu.core_type = #tpu.core_type<tc>, window_params = [{transform_indices = @transform_0, window_bounds = array<i64: 6, 1024>}, {transform_indices = @transform_1, window_bounds = array<i64: 1, 1024>}, {transform_indices = @transform_2, window_bounds = array<i64: 1, 1, 128>}]} {
    %c0 = arith.constant 0 : index
    %c0_0 = arith.constant 0 : index
    %0 = vector.load %arg1[%c0, %c0_0] : memref<6x1024xf32, #tpu.memory_space<vmem>>, vector<6x1024xf32>
    %c0_1 = arith.constant 0 : index
    %c0_2 = arith.constant 0 : index
    %1 = vector.load %arg2[%c0_1, %c0_2] : memref<1x1024xi8, #tpu.memory_space<vmem>>, vector<1x1024xi8>
    %2 = arith.extsi %1 : vector<1x1024xi8> to vector<1x1024xi32>
    %3 = tpu.iota {dimensions = array<i32: 0>} : vector<6x1024xi32>
    %4 = vector.broadcast %2 : vector<1x1024xi32> to vector<6x1024xi32>
    %5 = arith.cmpi eq, %3, %4 : vector<6x1024xi32>
    %cst = arith.constant dense<0xFF800000> : vector<1024xf32>
    %6 = vector.multi_reduction <maximumf>, %0, %cst [0] : vector<6x1024xf32> to vector<1024xf32>
    %7 = vector.shape_cast %6 : vector<1024xf32> to vector<1x1024xf32>
    %8 = vector.broadcast %7 : vector<1x1024xf32> to vector<6x1024xf32>
    %9 = arith.subf %0, %8 : vector<6x1024xf32>
    %10 = math.exp %9 : vector<6x1024xf32>
    %cst_3 = arith.constant dense<0.000000e+00> : vector<1024xf32>
    %11 = vector.multi_reduction <add>, %10, %cst_3 [0] : vector<6x1024xf32> to vector<1024xf32>
    %12 = vector.shape_cast %11 : vector<1024xf32> to vector<1x1024xf32>
    %13 = tpu.reciprocal %12 : vector<1x1024xf32> -> vector<1x1024xf32>
    %14 = math.log %12 : vector<1x1024xf32>
    %cst_4 = arith.constant 0xFF800000 : f32
    %15 = vector.broadcast %cst_4 : f32 to vector<6x1024xf32>
    %16 = arith.select %5, %0, %15 : vector<6x1024xi1>, vector<6x1024xf32>
    %cst_5 = arith.constant dense<0xFF800000> : vector<1024xf32>
    %17 = vector.multi_reduction <maximumf>, %16, %cst_5 [0] : vector<6x1024xf32> to vector<1024xf32>
    %18 = vector.shape_cast %17 : vector<1024xf32> to vector<1x1024xf32>
    %19 = arith.addf %7, %14 : vector<1x1024xf32>
    %20 = arith.subf %19, %18 : vector<1x1024xf32>
    %21 = vector.broadcast %13 : vector<1x1024xf32> to vector<6x1024xf32>
    %22 = arith.mulf %10, %21 : vector<6x1024xf32>
    %cst_6 = arith.constant 1.000000e-07 : f32
    %cst_7 = arith.constant 1.000000e+00 : f32
    %23 = vector.broadcast %cst_6 : f32 to vector<6x1024xf32>
    %24 = arith.maximumf %23, %22 : vector<6x1024xf32>
    %25 = vector.broadcast %cst_7 : f32 to vector<6x1024xf32>
    %26 = arith.minimumf %25, %24 : vector<6x1024xf32>
    %cst_8 = arith.constant dense<0.000000e+00> : vector<1024xf32>
    %27 = vector.multi_reduction <add>, %26, %cst_8 [0] : vector<6x1024xf32> to vector<1024xf32>
    %28 = vector.shape_cast %27 : vector<1024xf32> to vector<1x1024xf32>
    %cst_9 = arith.constant 0.000000e+00 : f32
    %29 = vector.broadcast %cst_9 : f32 to vector<6x1024xf32>
    %30 = arith.select %5, %26, %29 : vector<6x1024xi1>, vector<6x1024xf32>
    %cst_10 = arith.constant dense<0xFF800000> : vector<1024xf32>
    %31 = vector.multi_reduction <maximumf>, %30, %cst_10 [0] : vector<6x1024xf32> to vector<1024xf32>
    %32 = vector.shape_cast %31 : vector<1024xf32> to vector<1x1024xf32>
    %33 = arith.subf %28, %32 : vector<1x1024xf32>
    %cst_11 = arith.constant 9.21034049 : f32
    %34 = vector.broadcast %cst_11 : f32 to vector<1x1024xf32>
    %35 = arith.mulf %34, %33 : vector<1x1024xf32>
    %cst_12 = arith.constant 1.000000e-01 : f32
    %36 = vector.broadcast %cst_12 : f32 to vector<1x1024xf32>
    %37 = arith.mulf %36, %20 : vector<1x1024xf32>
    %38 = arith.addf %37, %35 : vector<1x1024xf32>
    %c0_i32 = arith.constant 0 : i32
    %39 = arith.cmpi eq, %arg0, %c0_i32 : i32
    %40 = arith.extui %39 : i1 to i32
    %c0_i32_13 = arith.constant 0 : i32
    %41 = arith.cmpi ne, %40, %c0_i32_13 : i32
    scf.if %41 {
      %45 = tpu.iota {dimensions = array<i32: 1>} : vector<1x1024xi32>
      %c1000_i32 = arith.constant 1000 : i32
      %46 = vector.broadcast %c1000_i32 : i32 to vector<1x1024xi32>
      %47 = arith.cmpi slt, %45, %46 : vector<1x1024xi32>
      %cst_16 = arith.constant 0.000000e+00 : f32
      %48 = vector.broadcast %cst_16 : f32 to vector<1x1024xf32>
      %49 = arith.select %47, %38, %48 : vector<1x1024xi1>, vector<1x1024xf32>
      %50 = vector.extract_strided_slice %49 {offsets = [0, 0], sizes = [1, 128], strides = [1, 1]} : vector<1x1024xf32> to vector<1x128xf32>
      %51 = vector.extract_strided_slice %49 {offsets = [0, 128], sizes = [1, 128], strides = [1, 1]} : vector<1x1024xf32> to vector<1x128xf32>
      %52 = arith.addf %50, %51 : vector<1x128xf32>
      %53 = vector.extract_strided_slice %49 {offsets = [0, 256], sizes = [1, 128], strides = [1, 1]} : vector<1x1024xf32> to vector<1x128xf32>
      %54 = arith.addf %52, %53 : vector<1x128xf32>
      %55 = vector.extract_strided_slice %49 {offsets = [0, 384], sizes = [1, 128], strides = [1, 1]} : vector<1x1024xf32> to vector<1x128xf32>
      %56 = arith.addf %54, %55 : vector<1x128xf32>
      %57 = vector.extract_strided_slice %49 {offsets = [0, 512], sizes = [1, 128], strides = [1, 1]} : vector<1x1024xf32> to vector<1x128xf32>
      %58 = arith.addf %56, %57 : vector<1x128xf32>
      %59 = vector.extract_strided_slice %49 {offsets = [0, 640], sizes = [1, 128], strides = [1, 1]} : vector<1x1024xf32> to vector<1x128xf32>
      %60 = arith.addf %58, %59 : vector<1x128xf32>
      %61 = vector.extract_strided_slice %49 {offsets = [0, 768], sizes = [1, 128], strides = [1, 1]} : vector<1x1024xf32> to vector<1x128xf32>
      %62 = arith.addf %60, %61 : vector<1x128xf32>
      %63 = vector.extract_strided_slice %49 {offsets = [0, 896], sizes = [1, 128], strides = [1, 1]} : vector<1x1024xf32> to vector<1x128xf32>
      %64 = arith.addf %62, %63 : vector<1x128xf32>
      %c0_17 = arith.constant 0 : index
      %c0_18 = arith.constant 0 : index
      %c0_19 = arith.constant 0 : index
      %65 = vector.load %arg3[%c0_17, %c0_18, %c0_19] : memref<1x1x128xf32, #tpu.memory_space<vmem>>, vector<1x1x128xf32>
      %66 = vector.shape_cast %65 : vector<1x1x128xf32> to vector<1x128xf32>
      %67 = vector.shape_cast %64 : vector<1x128xf32> to vector<1x1x128xf32>
      tpu.vector_store %arg3[%c0_17, %c0_18, %c0_19], %67 {strides = array<i32>} : memref<1x1x128xf32, #tpu.memory_space<vmem>>, vector<1x1x128xf32>,
    } else {
    }
    %c0_i32_14 = arith.constant 0 : i32
    %42 = arith.cmpi slt, %arg0, %c0_i32_14 : i32
    %43 = arith.extui %42 : i1 to i32
    %c0_i32_15 = arith.constant 0 : i32
    %44 = arith.cmpi ne, %43, %c0_i32_15 : i32
    scf.if %44 {
      %45 = vector.extract_strided_slice %38 {offsets = [0, 0], sizes = [1, 128], strides = [1, 1]} : vector<1x1024xf32> to vector<1x128xf32>
      %46 = vector.extract_strided_slice %38 {offsets = [0, 128], sizes = [1, 128], strides = [1, 1]} : vector<1x1024xf32> to vector<1x128xf32>
      %47 = arith.addf %45, %46 : vector<1x128xf32>
      %48 = vector.extract_strided_slice %38 {offsets = [0, 256], sizes = [1, 128], strides = [1, 1]} : vector<1x1024xf32> to vector<1x128xf32>
      %49 = arith.addf %47, %48 : vector<1x128xf32>
      %50 = vector.extract_strided_slice %38 {offsets = [0, 384], sizes = [1, 128], strides = [1, 1]} : vector<1x1024xf32> to vector<1x128xf32>
      %51 = arith.addf %49, %50 : vector<1x128xf32>
      %52 = vector.extract_strided_slice %38 {offsets = [0, 512], sizes = [1, 128], strides = [1, 1]} : vector<1x1024xf32> to vector<1x128xf32>
      %53 = arith.addf %51, %52 : vector<1x128xf32>
      %54 = vector.extract_strided_slice %38 {offsets = [0, 640], sizes = [1, 128], strides = [1, 1]} : vector<1x1024xf32> to vector<1x128xf32>
      %55 = arith.addf %53, %54 : vector<1x128xf32>
      %56 = vector.extract_strided_slice %38 {offsets = [0, 768], sizes = [1, 128], strides = [1, 1]} : vector<1x1024xf32> to vector<1x128xf32>
      %57 = arith.addf %55, %56 : vector<1x128xf32>
      %58 = vector.extract_strided_slice %38 {offsets = [0, 896], sizes = [1, 128], strides = [1, 1]} : vector<1x1024xf32> to vector<1x128xf32>
      %59 = arith.addf %57, %58 : vector<1x128xf32>
      %c0_16 = arith.constant 0 : index
      %c0_17 = arith.constant 0 : index
      %c0_18 = arith.constant 0 : index
      %60 = vector.load %arg3[%c0_16, %c0_17, %c0_18] : memref<1x1x128xf32, #tpu.memory_space<vmem>>, vector<1x1x128xf32>
      %61 = vector.shape_cast %60 : vector<1x1x128xf32> to vector<1x128xf32>
      %62 = vector.shape_cast %59 : vector<1x128xf32> to vector<1x1x128xf32>
      tpu.vector_store %arg3[%c0_16, %c0_17, %c0_18], %62 {strides = array<i32>} : memref<1x1x128xf32, #tpu.memory_space<vmem>>, vector<1x1x128xf32>,
    } else {
    }
    return
  }
  func.func @transform_0(%arg0: i32) -> (i32, i32) {
    %c0_i32 = arith.constant 0 : i32
    %c0_i32_0 = arith.constant 0 : i32
    return %c0_i32, %arg0 : i32, i32
  }
  func.func @transform_1(%arg0: i32) -> (i32, i32) {
    %c0_i32 = arith.constant 0 : i32
    %c0_i32_0 = arith.constant 0 : i32
    return %c0_i32, %arg0 : i32, i32
  }
  func.func @transform_2(%arg0: i32) -> (i32, i32, i32) {
    %c0_i32 = arith.constant 0 : i32
    %c0_i32_0 = arith.constant 0 : i32
    %c0_i32_1 = arith.constant 0 : i32
    return %arg0, %c0_i32, %c0_i32_0 : i32, i32, i32
  }
}

</mosaic_0001>

<llo_original>
// kernel: tpu_custom_call.1
$region0: #{tpu_custom_call.1}
  #allocation0 [shape = 'u32[]', space=smem, size = 0x4, offset = 0x4, fixed_abs, tag = 'smem constant byte address 0x4 - core index']
  #allocation1 [shape = 'u32[144,128]{1,0:T(1,128)}', space=vmem, size = 0x12000, scoped, tag = 'internal scratch']
  %s0 = inlined_call_operand.hbm [shape: f32[6,1000], index: 0, kind: input, shape index: {}]
  %s1 = inlined_call_operand.hbm [shape: s8[1,1000], index: 1, kind: input, shape index: {}]
  %s2 = inlined_call_operand.hbm [shape: f32[1,1,128], index: 2, kind: output, shape index: {}]
  %s3 = sld [smem:[#allocation0]]
  $region34: #{tpu_custom_call.1} parent=0
    _
  %s5 = ssub.s32 1, %s3
  %s6 = scalar_select 0, %s5, %s3
  $region1: #{tpu_custom_call.1} parent=0
    #allocation2 [shape = 'u8[32768]{0}', space=vmem, size = 0x8000, scoped, tag = 'input window, operand 0, single buffered']
    #allocation3 [shape = 's32[1]{0}', space=sflag, size = 0x4, scoped, tag = 'scoped memory for tpu_custom_call.1']
    #allocation4 [shape = 's32[1]{0}', space=sflag, size = 0x4, scoped, tag = 'scoped memory for tpu_custom_call.1']
    #allocation5 [shape = 'u8[4096]{0}', space=vmem, size = 0x1000, scoped, tag = 'input window, operand 1, single buffered']
    #allocation6 [shape = 's32[1]{0}', space=sflag, size = 0x4, scoped, tag = 'scoped memory for tpu_custom_call.1']
    #allocation7 [shape = 'u8[512]{0}', space=vmem, size = 0x400, scoped, tag = 'output window, operand 0, single buffered']
    %7 = vsyncpa [#allocation3], 0
    %8 = vsyncpa [#allocation6], 0
    %9 = vsyncpa [#allocation4], 0
    // Predicated region
    $region2: #{tpu_custom_call.1} parent=1 // pred_check
      _
    $region3: #{tpu_custom_call.1} parent=1 // pred_check_branch
      %11 = sbr.rel (0) target = $region5
    $region4: #{tpu_custom_call.1} parent=1 // pred_region
      %s13 = ssub.s32 1024, 1024
      %14 = vsyncadd [#allocation3], %s13
      %s16 = sshll.u32 [#allocation2], 4
      %s17 = int_to_ptr.vmem [resolvable:$true] %s16
      %19 = dma.hbm_to_vmem [thread:$0]  %s0, 1024, %s17, [#allocation3]
    $region5: #{tpu_custom_call.1} parent=1 // pred_fallthru
      _
    // Predicated region
    $region6: #{tpu_custom_call.1} parent=1 // pred_check
      _
    $region7: #{tpu_custom_call.1} parent=1 // pred_check_branch
      %21 = sbr.rel (0) target = $region9
    $region8: #{tpu_custom_call.1} parent=1 // pred_region
      %s23 = ssub.s32 128, 128
      %24 = vsyncadd [#allocation6], %s23
      %s26 = sshll.u32 [#allocation5], 4
      %s27 = int_to_ptr.vmem [resolvable:$true] %s26
      %29 = dma.hbm_to_vmem [thread:$0]  %s1, 128, %s27, [#allocation6]
    $region9: #{tpu_custom_call.1} parent=1 // pred_fallthru
      _
    // Predicated region
    $region10: #{tpu_custom_call.1} parent=1 // pred_check
      _
    $region11: #{tpu_custom_call.1} parent=1 // pred_check_branch
      %31 = sbr.rel (0) target = $region13
    $region12: #{tpu_custom_call.1} parent=1 // pred_region
      %32 = dma.done [#allocation3], 1024
    $region13: #{tpu_custom_call.1} parent=1 // pred_fallthru
      _
    // Predicated region
    $region14: #{tpu_custom_call.1} parent=1 // pred_check
      _
    $region15: #{tpu_custom_call.1} parent=1 // pred_check_branch
      %34 = sbr.rel (0) target = $region17
    $region16: #{tpu_custom_call.1} parent=1 // pred_region
      %35 = dma.done [#allocation6], 128
    $region17: #{tpu_custom_call.1} parent=1 // pred_fallthru
      _
    %v36 = vld [vmem:[#allocation2] sm:$0x3f]
    %v37 = vld [vmem:[#allocation2 + $0x8] sm:$0x3f]
    %v38 = vld [vmem:[#allocation2 + $0x10] sm:$0x3f]
    %v39 = vld [vmem:[#allocation2 + $0x18] sm:$0x3f]
    %v40 = vld [vmem:[#allocation2 + $0x20] sm:$0x3f]
    %v41 = vld [vmem:[#allocation2 + $0x28] sm:$0x3f]
    %v42 = vld [vmem:[#allocation2 + $0x30] sm:$0x3f]
    %v43 = vld [vmem:[#allocation2 + $0x38] sm:$0x3f]
    %v44 = vld [vmem:[#allocation5] sm:$0xff]
    %v45 = vunpack.c.0.s8 %v44
    %v46 = vunpack.c.1.s8 %v44
    %v47 = vunpack.c.2.s8 %v44
    %v48 = vunpack.c.3.s8 %v44
    %v49 = vlaneseq
    %v50 = vshrl.u32 %v49, 7
    %v51 = vlaneseq
    %v52 = vshrl.u32 %v51, 7
    %v53 = vsub.s32 0, %v52
    %v54 = vrot.slane %v45, %v53
    %v55 = vlaneseq
    %v56 = vshrl.u32 %v55, 7
    %v57 = vsub.s32 4, %v56
    %v58 = vrot.slane %v45, %v57
    %v59 = vlaneseq
    %v60 = vshrl.u32 %v59, 7
    %v61 = vsub.s32 0, %v60
    %v62 = vrot.slane %v46, %v61
    %v63 = vlaneseq
    %v64 = vshrl.u32 %v63, 7
    %v65 = vsub.s32 4, %v64
    %v66 = vrot.slane %v46, %v65
    %v67 = vlaneseq
    %v68 = vshrl.u32 %v67, 7
    %v69 = vsub.s32 0, %v68
    %v70 = vrot.slane %v47, %v69
    %v71 = vlaneseq
    %v72 = vshrl.u32 %v71, 7
    %v73 = vsub.s32 4, %v72
    %v74 = vrot.slane %v47, %v73
    %v75 = vlaneseq
    %v76 = vshrl.u32 %v75, 7
    %v77 = vsub.s32 0, %v76
    %v78 = vrot.slane %v48, %v77
    %v79 = vlaneseq
    %v80 = vshrl.u32 %v79, 7
    %v81 = vsub.s32 4, %v80
    %v82 = vrot.slane %v48, %v81
    %v83 = vlaneseq
    %v84 = vshrl.u32 %v83, 7
    %v85 = vsub.s32 0, %v84
    %v86 = vrot.slane %v54, %v85
    %v87 = vlaneseq
    %v88 = vshrl.u32 %v87, 7
    %v89 = vsub.s32 0, %v88
    %v90 = vrot.slane %v58, %v89
    %v91 = vlaneseq
    %v92 = vshrl.u32 %v91, 7
    %v93 = vsub.s32 0, %v92
    %v94 = vrot.slane %v62, %v93
    %v95 = vlaneseq
    %v96 = vshrl.u32 %v95, 7
    %v97 = vsub.s32 0, %v96
    %v98 = vrot.slane %v66, %v97
    %v99 = vlaneseq
    %v100 = vshrl.u32 %v99, 7
    %v101 = vsub.s32 0, %v100
    %v102 = vrot.slane %v70, %v101
    %v103 = vlaneseq
    %v104 = vshrl.u32 %v103, 7
    %v105 = vsub.s32 0, %v104
    %v106 = vrot.slane %v74, %v105
    %v107 = vlaneseq
    %v108 = vshrl.u32 %v107, 7
    %v109 = vsub.s32 0, %v108
    %v110 = vrot.slane %v78, %v109
    %v111 = vlaneseq
    %v112 = vshrl.u32 %v111, 7
    %v113 = vsub.s32 0, %v112
    %v114 = vrot.slane %v82, %v113
    %vm115 = vcmp.eq.s32.totalorder %v50, %v86
    %vm116 = vcmp.eq.s32.totalorder %v50, %v90
    %vm117 = vcmp.eq.s32.totalorder %v50, %v94
    %vm118 = vcmp.eq.s32.totalorder %v50, %v98
    %vm119 = vcmp.eq.s32.totalorder %v50, %v102
    %vm120 = vcmp.eq.s32.totalorder %v50, %v106
    %vm121 = vcmp.eq.s32.totalorder %v50, %v110
    %vm122 = vcmp.eq.s32.totalorder %v50, %v114
    %vm123 = vcmask 1045504
    %v124 = vsel %vm123, %v36, -inf
    %v125 = vrot.slane %v124, 4
    %v126 = vmax.f32 %v124, %v125
    %v127 = vrot.slane %v126, 2
    %v128 = vmax.f32 %v126, %v127
    %v129 = vrot.slane %v128, 1
    %v130 = vmax.f32 %v128, %v129
    %v131 = vsel %vm123, %v37, -inf
    %v132 = vrot.slane %v131, 4
    %v133 = vmax.f32 %v131, %v132
    %v134 = vrot.slane %v133, 2
    %v135 = vmax.f32 %v133, %v134
    %v136 = vrot.slane %v135, 1
    %v137 = vmax.f32 %v135, %v136
    %v138 = vsel %vm123, %v38, -inf
    %v139 = vrot.slane %v138, 4
    %v140 = vmax.f32 %v138, %v139
    %v141 = vrot.slane %v140, 2
    %v142 = vmax.f32 %v140, %v141
    %v143 = vrot.slane %v142, 1
    %v144 = vmax.f32 %v142, %v143
    %v145 = vsel %vm123, %v39, -inf
    %v146 = vrot.slane %v145, 4
    %v147 = vmax.f32 %v145, %v146
    %v148 = vrot.slane %v147, 2
    %v149 = vmax.f32 %v147, %v148
    %v150 = vrot.slane %v149, 1
    %v151 = vmax.f32 %v149, %v150
    %v152 = vsel %vm123, %v40, -inf
    %v153 = vrot.slane %v152, 4
    %v154 = vmax.f32 %v152, %v153
    %v155 = vrot.slane %v154, 2
    %v156 = vmax.f32 %v154, %v155
    %v157 = vrot.slane %v156, 1
    %v158 = vmax.f32 %v156, %v157
    %v159 = vsel %vm123, %v41, -inf
    %v160 = vrot.slane %v159, 4
    %v161 = vmax.f32 %v159, %v160
    %v162 = vrot.slane %v161, 2
    %v163 = vmax.f32 %v161, %v162
    %v164 = vrot.slane %v163, 1
    %v165 = vmax.f32 %v163, %v164
    %v166 = vsel %vm123, %v42, -inf
    %v167 = vrot.slane %v166, 4
    %v168 = vmax.f32 %v166, %v167
    %v169 = vrot.slane %v168, 2
    %v170 = vmax.f32 %v168, %v169
    %v171 = vrot.slane %v170, 1
    %v172 = vmax.f32 %v170, %v171
    %v173 = vsel %vm123, %v43, -inf
    %v174 = vrot.slane %v173, 4
    %v175 = vmax.f32 %v173, %v174
    %v176 = vrot.slane %v175, 2
    %v177 = vmax.f32 %v175, %v176
    %v178 = vrot.slane %v177, 1
    %v179 = vmax.f32 %v177, %v178
    %v180 = vsub.f32 %v36, %v130
    %v181 = vsub.f32 %v37, %v137
    %v182 = vsub.f32 %v38, %v144
    %v183 = vsub.f32 %v39, %v151
    %v184 = vsub.f32 %v40, %v158
    %v185 = vsub.f32 %v41, %v165
    %v186 = vsub.f32 %v42, %v172
    %v187 = vsub.f32 %v43, %v179
    %v188 = vmul.f32 %v180, 1.442695
    %v189 = vpow.pop %v188
    %v190 = vmul.f32 %v181, 1.442695
    %v191 = vpow.pop %v190
    %v192 = vmul.f32 %v182, 1.442695
    %v193 = vpow.pop %v192
    %v194 = vmul.f32 %v183, 1.442695
    %v195 = vpow.pop %v194
    %v196 = vmul.f32 %v184, 1.442695
    %v197 = vpow.pop %v196
    %v198 = vmul.f32 %v185, 1.442695
    %v199 = vpow.pop %v198
    %v200 = vmul.f32 %v186, 1.442695
    %v201 = vpow.pop %v200
    %v202 = vmul.f32 %v187, 1.442695
    %v203 = vpow.pop %v202
    %v204 = vsel %vm123, %v189, 0.0
    %v205 = vrot.slane %v204, 4
    %v206 = vadd.f32 %v204, %v205
    %v207 = vrot.slane %v206, 2
    %v208 = vadd.f32 %v206, %v207
    %v209 = vrot.slane %v208, 1
    %v210 = vadd.f32 %v208, %v209
    %v211 = vsel %vm123, %v191, 0.0
    %v212 = vrot.slane %v211, 4
    %v213 = vadd.f32 %v211, %v212
    %v214 = vrot.slane %v213, 2
    %v215 = vadd.f32 %v213, %v214
    %v216 = vrot.slane %v215, 1
    %v217 = vadd.f32 %v215, %v216
    %v218 = vsel %vm123, %v193, 0.0
    %v219 = vrot.slane %v218, 4
    %v220 = vadd.f32 %v218, %v219
    %v221 = vrot.slane %v220, 2
    %v222 = vadd.f32 %v220, %v221
    %v223 = vrot.slane %v222, 1
    %v224 = vadd.f32 %v222, %v223
    %v225 = vsel %vm123, %v195, 0.0
    %v226 = vrot.slane %v225, 4
    %v227 = vadd.f32 %v225, %v226
    %v228 = vrot.slane %v227, 2
    %v229 = vadd.f32 %v227, %v228
    %v230 = vrot.slane %v229, 1
    %v231 = vadd.f32 %v229, %v230
    %v232 = vsel %vm123, %v197, 0.0
    %v233 = vrot.slane %v232, 4
    %v234 = vadd.f32 %v232, %v233
    %v235 = vrot.slane %v234, 2
    %v236 = vadd.f32 %v234, %v235
    %v237 = vrot.slane %v236, 1
    %v238 = vadd.f32 %v236, %v237
    %v239 = vsel %vm123, %v199, 0.0
    %v240 = vrot.slane %v239, 4
    %v241 = vadd.f32 %v239, %v240
    %v242 = vrot.slane %v241, 2
    %v243 = vadd.f32 %v241, %v242
    %v244 = vrot.slane %v243, 1
    %v245 = vadd.f32 %v243, %v244
    %v246 = vsel %vm123, %v201, 0.0
    %v247 = vrot.slane %v246, 4
    %v248 = vadd.f32 %v246, %v247
    %v249 = vrot.slane %v248, 2
    %v250 = vadd.f32 %v248, %v249
    %v251 = vrot.slane %v250, 1
    %v252 = vadd.f32 %v250, %v251
    %v253 = vsel %vm123, %v203, 0.0
    %v254 = vrot.slane %v253, 4
    %v255 = vadd.f32 %v253, %v254
    %v256 = vrot.slane %v255, 2
    %v257 = vadd.f32 %v255, %v256
    %v258 = vrot.slane %v257, 1
    %v259 = vadd.f32 %v257, %v258
    %v260 = vrcp.pop %v210
    %v261 = vrcp.pop %v217
    %v262 = vrcp.pop %v224
    %v263 = vrcp.pop %v231
    %v264 = vrcp.pop %v238
    %v265 = vrcp.pop %v245
    %v266 = vrcp.pop %v252
    %v267 = vrcp.pop %v259
    %v268 = vlog2.pop %v210
    %v269 = vmul.f32 %v268, 0.6931472
    %v270 = vlog2.pop %v217
    %v271 = vmul.f32 %v270, 0.6931472
    %v272 = vlog2.pop %v224
    %v273 = vmul.f32 %v272, 0.6931472
    %v274 = vlog2.pop %v231
    %v275 = vmul.f32 %v274, 0.6931472
    %v276 = vlog2.pop %v238
    %v277 = vmul.f32 %v276, 0.6931472
    %v278 = vlog2.pop %v245
    %v279 = vmul.f32 %v278, 0.6931472
    %v280 = vlog2.pop %v252
    %v281 = vmul.f32 %v280, 0.6931472
    %v282 = vlog2.pop %v259
    %v283 = vmul.f32 %v282, 0.6931472
    %v284 = vsel %vm115, %v36, -inf
    %v285 = vsel %vm116, %v37, -inf
    %v286 = vsel %vm117, %v38, -inf
    %v287 = vsel %vm118, %v39, -inf
    %v288 = vsel %vm119, %v40, -inf
    %v289 = vsel %vm120, %v41, -inf
    %v290 = vsel %vm121, %v42, -inf
    %v291 = vsel %vm122, %v43, -inf
    %v292 = vsel %vm123, %v284, -inf
    %v293 = vrot.slane %v292, 4
    %v294 = vmax.f32 %v292, %v293
    %v295 = vrot.slane %v294, 2
    %v296 = vmax.f32 %v294, %v295
    %v297 = vrot.slane %v296, 1
    %v298 = vmax.f32 %v296, %v297
    %v299 = vsel %vm123, %v285, -inf
    %v300 = vrot.slane %v299, 4
    %v301 = vmax.f32 %v299, %v300
    %v302 = vrot.slane %v301, 2
    %v303 = vmax.f32 %v301, %v302
    %v304 = vrot.slane %v303, 1
    %v305 = vmax.f32 %v303, %v304
    %v306 = vsel %vm123, %v286, -inf
    %v307 = vrot.slane %v306, 4
    %v308 = vmax.f32 %v306, %v307
    %v309 = vrot.slane %v308, 2
    %v310 = vmax.f32 %v308, %v309
    %v311 = vrot.slane %v310, 1
    %v312 = vmax.f32 %v310, %v311
    %v313 = vsel %vm123, %v287, -inf
    %v314 = vrot.slane %v313, 4
    %v315 = vmax.f32 %v313, %v314
    %v316 = vrot.slane %v315, 2
    %v317 = vmax.f32 %v315, %v316
    %v318 = vrot.slane %v317, 1
    %v319 = vmax.f32 %v317, %v318
    %v320 = vsel %vm123, %v288, -inf
    %v321 = vrot.slane %v320, 4
    %v322 = vmax.f32 %v320, %v321
    %v323 = vrot.slane %v322, 2
    %v324 = vmax.f32 %v322, %v323
    %v325 = vrot.slane %v324, 1
    %v326 = vmax.f32 %v324, %v325
    %v327 = vsel %vm123, %v289, -inf
    %v328 = vrot.slane %v327, 4
    %v329 = vmax.f32 %v327, %v328
    %v330 = vrot.slane %v329, 2
    %v331 = vmax.f32 %v329, %v330
    %v332 = vrot.slane %v331, 1
    %v333 = vmax.f32 %v331, %v332
    %v334 = vsel %vm123, %v290, -inf
    %v335 = vrot.slane %v334, 4
    %v336 = vmax.f32 %v334, %v335
    %v337 = vrot.slane %v336, 2
    %v338 = vmax.f32 %v336, %v337
    %v339 = vrot.slane %v338, 1
    %v340 = vmax.f32 %v338, %v339
    %v341 = vsel %vm123, %v291, -inf
    %v342 = vrot.slane %v341, 4
    %v343 = vmax.f32 %v341, %v342
    %v344 = vrot.slane %v343, 2
    %v345 = vmax.f32 %v343, %v344
    %v346 = vrot.slane %v345, 1
    %v347 = vmax.f32 %v345, %v346
    %v348 = vadd.f32 %v130, %v269
    %v349 = vadd.f32 %v137, %v271
    %v350 = vadd.f32 %v144, %v273
    %v351 = vadd.f32 %v151, %v275
    %v352 = vadd.f32 %v158, %v277
    %v353 = vadd.f32 %v165, %v279
    %v354 = vadd.f32 %v172, %v281
    %v355 = vadd.f32 %v179, %v283
    %v356 = vsub.f32 %v348, %v298
    %v357 = vsub.f32 %v349, %v305
    %v358 = vsub.f32 %v350, %v312
    %v359 = vsub.f32 %v351, %v319
    %v360 = vsub.f32 %v352, %v326
    %v361 = vsub.f32 %v353, %v333
    %v362 = vsub.f32 %v354, %v340
    %v363 = vsub.f32 %v355, %v347
    %v364 = vmul.f32 %v189, %v260
    %v365 = vmul.f32 %v191, %v261
    %v366 = vmul.f32 %v193, %v262
    %v367 = vmul.f32 %v195, %v263
    %v368 = vmul.f32 %v197, %v264
    %v369 = vmul.f32 %v199, %v265
    %v370 = vmul.f32 %v201, %v266
    %v371 = vmul.f32 %v203, %v267
    %v372 = vmax.f32 %v364, 1e-07
    %v373 = vmax.f32 %v365, 1e-07
    %v374 = vmax.f32 %v366, 1e-07
    %v375 = vmax.f32 %v367, 1e-07
    %v376 = vmax.f32 %v368, 1e-07
    %v377 = vmax.f32 %v369, 1e-07
    %v378 = vmax.f32 %v370, 1e-07
    %v379 = vmax.f32 %v371, 1e-07
    %v380 = vmin.f32 %v372, 1.0
    %v381 = vmin.f32 %v373, 1.0
    %v382 = vmin.f32 %v374, 1.0
    %v383 = vmin.f32 %v375, 1.0
    %v384 = vmin.f32 %v376, 1.0
    %v385 = vmin.f32 %v377, 1.0
    %v386 = vmin.f32 %v378, 1.0
    %v387 = vmin.f32 %v379, 1.0
    %v388 = vsel %vm123, %v380, 0.0
    %v389 = vrot.slane %v388, 4
    %v390 = vadd.f32 %v388, %v389
    %v391 = vrot.slane %v390, 2
    %v392 = vadd.f32 %v390, %v391
    %v393 = vrot.slane %v392, 1
    %v394 = vadd.f32 %v392, %v393
    %v395 = vsel %vm123, %v381, 0.0
    %v396 = vrot.slane %v395, 4
    %v397 = vadd.f32 %v395, %v396
    %v398 = vrot.slane %v397, 2
    %v399 = vadd.f32 %v397, %v398
    %v400 = vrot.slane %v399, 1
    %v401 = vadd.f32 %v399, %v400
    %v402 = vsel %vm123, %v382, 0.0
    %v403 = vrot.slane %v402, 4
    %v404 = vadd.f32 %v402, %v403
    %v405 = vrot.slane %v404, 2
    %v406 = vadd.f32 %v404, %v405
    %v407 = vrot.slane %v406, 1
    %v408 = vadd.f32 %v406, %v407
    %v409 = vsel %vm123, %v383, 0.0
    %v410 = vrot.slane %v409, 4
    %v411 = vadd.f32 %v409, %v410
    %v412 = vrot.slane %v411, 2
    %v413 = vadd.f32 %v411, %v412
    %v414 = vrot.slane %v413, 1
    %v415 = vadd.f32 %v413, %v414
    %v416 = vsel %vm123, %v384, 0.0
    %v417 = vrot.slane %v416, 4
    %v418 = vadd.f32 %v416, %v417
    %v419 = vrot.slane %v418, 2
    %v420 = vadd.f32 %v418, %v419
    %v421 = vrot.slane %v420, 1
    %v422 = vadd.f32 %v420, %v421
    %v423 = vsel %vm123, %v385, 0.0
    %v424 = vrot.slane %v423, 4
    %v425 = vadd.f32 %v423, %v424
    %v426 = vrot.slane %v425, 2
    %v427 = vadd.f32 %v425, %v426
    %v428 = vrot.slane %v427, 1
    %v429 = vadd.f32 %v427, %v428
    %v430 = vsel %vm123, %v386, 0.0
    %v431 = vrot.slane %v430, 4
    %v432 = vadd.f32 %v430, %v431
    %v433 = vrot.slane %v432, 2
    %v434 = vadd.f32 %v432, %v433
    %v435 = vrot.slane %v434, 1
    %v436 = vadd.f32 %v434, %v435
    %v437 = vsel %vm123, %v387, 0.0
    %v438 = vrot.slane %v437, 4
    %v439 = vadd.f32 %v437, %v438
    %v440 = vrot.slane %v439, 2
    %v441 = vadd.f32 %v439, %v440
    %v442 = vrot.slane %v441, 1
    %v443 = vadd.f32 %v441, %v442
    %v444 = vsel %vm115, %v380, 0.0
    %v445 = vsel %vm116, %v381, 0.0
    %v446 = vsel %vm117, %v382, 0.0
    %v447 = vsel %vm118, %v383, 0.0
    %v448 = vsel %vm119, %v384, 0.0
    %v449 = vsel %vm120, %v385, 0.0
    %v450 = vsel %vm121, %v386, 0.0
    %v451 = vsel %vm122, %v387, 0.0
    %v452 = vsel %vm123, %v444, -inf
    %v453 = vrot.slane %v452, 4
    %v454 = vmax.f32 %v452, %v453
    %v455 = vrot.slane %v454, 2
    %v456 = vmax.f32 %v454, %v455
    %v457 = vrot.slane %v456, 1
    %v458 = vmax.f32 %v456, %v457
    %v459 = vsel %vm123, %v445, -inf
    %v460 = vrot.slane %v459, 4
    %v461 = vmax.f32 %v459, %v460
    %v462 = vrot.slane %v461, 2
    %v463 = vmax.f32 %v461, %v462
    %v464 = vrot.slane %v463, 1
    %v465 = vmax.f32 %v463, %v464
    %v466 = vsel %vm123, %v446, -inf
    %v467 = vrot.slane %v466, 4
    %v468 = vmax.f32 %v466, %v467
    %v469 = vrot.slane %v468, 2
    %v470 = vmax.f32 %v468, %v469
    %v471 = vrot.slane %v470, 1
    %v472 = vmax.f32 %v470, %v471
    %v473 = vsel %vm123, %v447, -inf
    %v474 = vrot.slane %v473, 4
    %v475 = vmax.f32 %v473, %v474
    %v476 = vrot.slane %v475, 2
    %v477 = vmax.f32 %v475, %v476
    %v478 = vrot.slane %v477, 1
    %v479 = vmax.f32 %v477, %v478
    %v480 = vsel %vm123, %v448, -inf
    %v481 = vrot.slane %v480, 4
    %v482 = vmax.f32 %v480, %v481
    %v483 = vrot.slane %v482, 2
    %v484 = vmax.f32 %v482, %v483
    %v485 = vrot.slane %v484, 1
    %v486 = vmax.f32 %v484, %v485
    %v487 = vsel %vm123, %v449, -inf
    %v488 = vrot.slane %v487, 4
    %v489 = vmax.f32 %v487, %v488
    %v490 = vrot.slane %v489, 2
    %v491 = vmax.f32 %v489, %v490
    %v492 = vrot.slane %v491, 1
    %v493 = vmax.f32 %v491, %v492
    %v494 = vsel %vm123, %v450, -inf
    %v495 = vrot.slane %v494, 4
    %v496 = vmax.f32 %v494, %v495
    %v497 = vrot.slane %v496, 2
    %v498 = vmax.f32 %v496, %v497
    %v499 = vrot.slane %v498, 1
    %v500 = vmax.f32 %v498, %v499
    %v501 = vsel %vm123, %v451, -inf
    %v502 = vrot.slane %v501, 4
    %v503 = vmax.f32 %v501, %v502
    %v504 = vrot.slane %v503, 2
    %v505 = vmax.f32 %v503, %v504
    %v506 = vrot.slane %v505, 1
    %v507 = vmax.f32 %v505, %v506
    %v508 = vsub.f32 %v394, %v458
    %v509 = vsub.f32 %v401, %v465
    %v510 = vsub.f32 %v408, %v472
    %v511 = vsub.f32 %v415, %v479
    %v512 = vsub.f32 %v422, %v486
    %v513 = vsub.f32 %v429, %v493
    %v514 = vsub.f32 %v436, %v500
    %v515 = vsub.f32 %v443, %v507
    %v516 = vmul.f32 %v508, 9.2103405
    %v517 = vmul.f32 %v509, 9.2103405
    %v518 = vmul.f32 %v510, 9.2103405
    %v519 = vmul.f32 %v511, 9.2103405
    %v520 = vmul.f32 %v512, 9.2103405
    %v521 = vmul.f32 %v513, 9.2103405
    %v522 = vmul.f32 %v514, 9.2103405
    %v523 = vmul.f32 %v515, 9.2103405
    %v524 = vmul.f32 %v356, 0.1
    %v525 = vmul.f32 %v357, 0.1
    %v526 = vmul.f32 %v358, 0.1
    %v527 = vmul.f32 %v359, 0.1
    %v528 = vmul.f32 %v360, 0.1
    %v529 = vmul.f32 %v361, 0.1
    %v530 = vmul.f32 %v362, 0.1
    %v531 = vmul.f32 %v363, 0.1
    %v532 = vadd.f32 %v524, %v516
    %v533 = vadd.f32 %v525, %v517
    %v534 = vadd.f32 %v526, %v518
    %v535 = vadd.f32 %v527, %v519
    %v536 = vadd.f32 %v528, %v520
    %v537 = vadd.f32 %v529, %v521
    %v538 = vadd.f32 %v530, %v522
    %v539 = vadd.f32 %v531, %v523
    %p540 = scmp.eq.s32.totalorder 0, 0
    // Predicated region
    $region18: #{tpu_custom_call.1} parent=1 // pred_check
      %p541 = pneg %p540
    $region19: #{tpu_custom_call.1} parent=1 // pred_check_branch
      %543 = sbr.rel (%p541) target = $region21
    $region20: #{tpu_custom_call.1} parent=1 // pred_region
      %v544 = vlaneseq
      %v545 = vand.u32 %v544, 127
      %v546 = vadd.s32 %v545, 128
      %v547 = vadd.s32 %v545, 256
      %v548 = vadd.s32 %v545, 384
      %v549 = vadd.s32 %v545, 512
      %v550 = vadd.s32 %v545, 640
      %v551 = vadd.s32 %v545, 768
      %v552 = vadd.s32 %v545, 896
      %vm553 = vcmp.lt.s32.totalorder %v545, 1000
      %vm554 = vcmp.lt.s32.totalorder %v546, 1000
      %vm555 = vcmp.lt.s32.totalorder %v547, 1000
      %vm556 = vcmp.lt.s32.totalorder %v548, 1000
      %vm557 = vcmp.lt.s32.totalorder %v549, 1000
      %vm558 = vcmp.lt.s32.totalorder %v550, 1000
      %vm559 = vcmp.lt.s32.totalorder %v551, 1000
      %vm560 = vcmp.lt.s32.totalorder %v552, 1000
      %v561 = vsel %vm553, %v532, 0.0
      %v562 = vsel %vm554, %v533, 0.0
      %v563 = vsel %vm555, %v534, 0.0
      %v564 = vsel %vm556, %v535, 0.0
      %v565 = vsel %vm557, %v536, 0.0
      %v566 = vsel %vm558, %v537, 0.0
      %v567 = vsel %vm559, %v538, 0.0
      %v568 = vsel %vm560, %v539, 0.0
      %v569 = vadd.f32 %v561, %v562
      %v570 = vadd.f32 %v569, %v563
      %v571 = vadd.f32 %v570, %v564
      %v572 = vadd.f32 %v571, %v565
      %v573 = vadd.f32 %v572, %v566
      %v574 = vadd.f32 %v573, %v567
      %v575 = vadd.f32 %v574, %v568
      %576 = vst [vmem:[#allocation7] sm:$0x1] %v575
    $region21: #{tpu_custom_call.1} parent=1 // pred_fallthru
      _
    %p577 = scmp.lt.s32.totalorder 0, 0
    // Predicated region
    $region22: #{tpu_custom_call.1} parent=1 // pred_check
      %p578 = pneg %p577
    $region23: #{tpu_custom_call.1} parent=1 // pred_check_branch
      %580 = sbr.rel (%p578) target = $region25
    $region24: #{tpu_custom_call.1} parent=1 // pred_region
      %v581 = vadd.f32 %v532, %v533
      %v582 = vadd.f32 %v581, %v534
      %v583 = vadd.f32 %v582, %v535
      %v584 = vadd.f32 %v583, %v536
      %v585 = vadd.f32 %v584, %v537
      %v586 = vadd.f32 %v585, %v538
      %v587 = vadd.f32 %v586, %v539
      %588 = vst [vmem:[#allocation7] sm:$0x1] %v587
    $region25: #{tpu_custom_call.1} parent=1 // pred_fallthru
      _
    // Predicated region
    $region26: #{tpu_custom_call.1} parent=1 // pred_check
      _
    $region27: #{tpu_custom_call.1} parent=1 // pred_check_branch
      %590 = sbr.rel (0) target = $region29
    $region28: #{tpu_custom_call.1} parent=1 // pred_region
      %s592 = ssub.s32 16, 16
      %593 = vsyncadd [#allocation4], %s592
      %s595 = sshll.u32 [#allocation7], 4
      %s596 = int_to_ptr.vmem [resolvable:$true] %s595
      %598 = dma.vmem_to_hbm [thread:$0]  %s596, 16, %s2, [#allocation4]
    $region29: #{tpu_custom_call.1} parent=1 // pred_fallthru
      _
    // Predicated region
    $region30: #{tpu_custom_call.1} parent=1 // pred_check
      _
    $region31: #{tpu_custom_call.1} parent=1 // pred_check_branch
      %600 = sbr.rel (0) target = $region33
    $region32: #{tpu_custom_call.1} parent=1 // pred_region
      %601 = dma.done [#allocation4], 16
    $region33: #{tpu_custom_call.1} parent=1 // pred_fallthru
      _
    %602 = vsyncpa [#allocation3], 1
    %603 = vsyncpa [#allocation6], 1
    %604 = vsyncpa [#allocation4], 1

</llo_original>
